<compile_context>
chip_gen: v6e
topology: v6e:2x2x1
jax: 0.10.0
libtpu: 0.0.40
codegen_flags: <defaults>
</compile_context>

<pallas_src>
import functools

import numpy as np
import jax
import jax.numpy as jnp
from jax import lax
from jax.experimental import pallas as pl
from jax.experimental.pallas import tpu as pltpu

KERNEL_SIZE = 7
NUM_ITERS = 50


def _gaussian_taps(kernel_size: int):
    # torch.signal.windows.gaussian(M, std=M/6), sym=True; the 2D outer product is
    # normalized by its sum == (sum g)^2, i.e. separable taps g / sum(g).
    std = kernel_size / 6.0
    n = np.arange(kernel_size, dtype=np.float64) - (kernel_size - 1) / 2.0
    g = np.exp(-0.5 * (n / std) ** 2)
    gn = g / g.sum()
    return tuple(float(v) for v in gn)


def _round_up(x: int, m: int) -> int:
    return ((x + m - 1) // m) * m


def _pick_batch_block(B: int, Hp: int, Wg: int) -> int:
    """How many images to pack side-by-side along the lane axis per grid step.

    Targets ~512 real lanes per step and caps the per-block f32 plane at 512 KiB.
    A second grid step (for v7x's two TensorCores) is only created when it keeps
    every step lane-dense (>= 128 real lanes); single-TC v5e/v6e lose nothing.
    """
    lane_imgs = max(1, -(-512 // max(Wg, 1)))              # ceil(512 / Wg)
    cap_imgs = max(1, (512 * 1024) // (4 * max(Hp, 1) * max(Wg, 1)))
    bt = max(1, min(B, lane_imgs, cap_imgs))
    if bt == B and B >= 2:
        half = -(-B // 2)
        if half < B and half * Wg >= 128:                  # still lane-dense
            bt = half
    return bt


def _hole_fill_kernel(x_ref, out_ref, done_ref, *, num_iters, taps, H, W, Wg, L, pad):
    """One batch block, laid out (1, Hp, Lp): bt images packed along lanes with a
    pad-wide zero gutter after each image and >= pad zero rows below the image.
    Gutters are re-zeroed every iteration, so the circular rolls reproduce the
    reference's zero padding and images never contaminate each other."""
    _, Hp, Lp = x_ref.shape
    sparse = x_ref[0]                          # (Hp, Lp)
    keep = sparse != 0.0                       # original measurements

    row = lax.broadcasted_iota(jnp.int32, (Hp, Lp), 0)
    col = lax.broadcasted_iota(jnp.int32, (Hp, Lp), 1)
    valid = (row < H) & (col < L) & ((col % Wg) < W)       # real image pixels
    valid_f = valid.astype(jnp.float32)

    t0 = taps[pad]

    def conv_sep(x):
        # Lane (W) pass: symmetric 7-tap stencil -> XLU rolls + VPU adds/muls.
        h = x * t0
        for s in range(1, pad + 1):
            t = taps[pad + s]                  # == taps[pad - s] (symmetric)
            h = h + t * (pltpu.roll(x, shift=s, axis=1) +
                         pltpu.roll(x, shift=Lp - s, axis=1))
        # Sublane (H) pass.
        y = h * t0
        for s in range(1, pad + 1):
            t = taps[pad + s]
            y = y + t * (pltpu.roll(h, shift=s, axis=0) +
                         pltpu.roll(h, shift=Hp - s, axis=0))
        return y

    # Neighbour count of a fully-filled image (== cnt_conv once every real pixel
    # is nonzero).  The clamp keeps it finite at gutter positions with an empty
    # footprint; the folded valid mask zeroes those outputs anyway.
    inv_cnt_valid = valid_f / jnp.maximum(conv_sep(valid_f), 1e-12)

    out_ref[0] = sparse
    done_ref[0] = jnp.int32(0)

    def slow_step(filled):
        mask = (filled != 0.0).astype(jnp.float32)
        sum_c = conv_sep(filled)               # two independent conv chains -> ILP
        cnt_c = conv_sep(mask)
        safe = jnp.maximum(cnt_c, 1e-12)       # cnt == 0  =>  sum == 0 exactly
        inv = pl.reciprocal(safe, approx=True) # EUP slot (otherwise idle)
        inv = inv * (2.0 - safe * inv)         # one Newton step: rel err ~1e-7
        return jnp.where(keep, sparse, sum_c * inv * valid_f)

    def fast_step(filled):
        return jnp.where(keep, sparse, conv_sep(filled) * inv_cnt_valid)

    def body(_it, carry):
        was_done = done_ref[0]

        @pl.when(was_done == 0)
        def _():
            new_filled = slow_step(out_ref[0])
            out_ref[0] = new_filled
            # Flip to the cheap path once every real pixel holds a value.
            # (Depth values stay positive, so fullness is monotone.)
            still_hole = valid_f * jnp.where(new_filled == 0.0, 1.0, 0.0)
            done_ref[0] = (jnp.sum(still_hole) == 0.0).astype(jnp.int32)

        @pl.when(was_done != 0)
        def _():
            out_ref[0] = fast_step(out_ref[0])

        return carry

    lax.fori_loop(0, num_iters, body, 0)


def smooth_hole_filler(sparse_depth, kernel_size=KERNEL_SIZE, num_iters=NUM_ITERS):
    assert sparse_depth.ndim == 4 and sparse_depth.shape[1] == 1, \
        "Input must be of shape (B, 1, H, W)"
    B, _, H, W = sparse_depth.shape
    pad = (kernel_size - 1) // 2
    taps = _gaussian_taps(kernel_size)

    x = sparse_depth.astype(jnp.float32).reshape(B, H, W)

    # --- layout plumbing (plain XLA, amortized over the 50-iteration kernel) ---
    Wg = W + pad                               # image + zero gutter along lanes
    Hp = _round_up(H + pad, 8)                 # >= pad zero rows below the image
    bt = _pick_batch_block(B, Hp, Wg)
    G = -(-B // bt)
    Bp = G * bt
    if Bp != B:
        # Pad the batch with all-ones images: they are "fully observed", isolated
        # by the gutters from real images, and cropped away at the end.
        x = jnp.concatenate([x, jnp.ones((Bp - B, H, W), jnp.float32)], axis=0)
    x = jnp.pad(x, ((0, 0), (0, Hp - H), (0, Wg - W)))      # zero gutters
    x = x.reshape(G, bt, Hp, Wg).transpose(0, 2, 1, 3).reshape(G, Hp, bt * Wg)
    L = bt * Wg
    Lp = _round_up(L, 128)                                   # lane-dense tiles
    if Lp != L:
        x = jnp.pad(x, ((0, 0), (0, 0), (0, Lp - L)))

    out = pl.pallas_call(
        functools.partial(_hole_fill_kernel, num_iters=num_iters, taps=taps,
                          H=H, W=W, Wg=Wg, L=L, pad=pad),
        out_shape=jax.ShapeDtypeStruct((G, Hp, Lp), jnp.float32),
        grid_spec=pltpu.PrefetchScalarGridSpec(
            num_scalar_prefetch=0,
            grid=(G,),
            in_specs=[pl.BlockSpec((1, Hp, Lp), lambda g: (g, 0, 0))],
            out_specs=pl.BlockSpec((1, Hp, Lp), lambda g: (g, 0, 0)),
            scratch_shapes=[pltpu.SMEM((1,), jnp.int32)],
        ),
        compiler_params=pltpu.CompilerParams(
            dimension_semantics=("parallel",),
            vmem_limit_bytes=32 * 1024 * 1024,
        ),
    )(x)

    # undo the packing / padding
    out = out[:, :, :L].reshape(G, Hp, bt, Wg).transpose(0, 2, 1, 3)
    out = out.reshape(Bp, Hp, Wg)[:B, :H, :W]
    return out.reshape(B, 1, H, W)


def smooth_hole_filler_ref(sparse_depth, kernel_size=KERNEL_SIZE, num_iters=NUM_ITERS):
    """Pure-JAX reference mirroring the PyTorch forward (direct 2D conv)."""
    std = kernel_size / 6.0
    n = np.arange(kernel_size, dtype=np.float64) - (kernel_size - 1) / 2.0
    g = np.exp(-0.5 * (n / std) ** 2)
    w2 = np.outer(g, g)
    w2 = w2 / w2.sum()
    kern = jnp.asarray(w2.astype(np.float32))[None, None]    # (1, 1, K, K)
    p = (kernel_size - 1) // 2

    def conv(x):
        return lax.conv_general_dilated(
            x, kern, window_strides=(1, 1), padding=[(p, p), (p, p)],
            dimension_numbers=("NCHW", "OIHW", "NCHW"))

    sparse = sparse_depth.astype(jnp.float32)
    filled = sparse
    for _ in range(num_iters):
        mask = (filled != 0).astype(jnp.float32)
        s = conv(filled)
        c = conv(mask)
        avg = jnp.where(c > 0, s / jnp.where(c > 0, c, 1.0), 0.0)
        filled = jnp.where(sparse != 0, sparse, avg)
    return filled


if __name__ == "__main__":
    key = jax.random.PRNGKey(0)
    k_depth, k_holes = jax.random.split(key)

    B, H, W = 2, 16, 16
    depth = jax.random.uniform(k_depth, (B, 1, H, W), minval=0.5, maxval=5.0)
    holes = jax.random.uniform(k_holes, (B, 1, H, W)) < 0.7   # ~70% holes
    sparse_depth = jnp.where(holes, 0.0, depth).astype(jnp.float32)

    out = smooth_hole_filler(sparse_depth)
    out = jax.block_until_ready(out)

    ref = smooth_hole_filler_ref(sparse_depth)
    assert out.shape == (B, 1, H, W)
    max_err = float(jnp.max(jnp.abs(out - ref)))
    if max_err < 1e-3:
        print("KERNEL_OK")
    else:
        print(f"MISMATCH max_err={max_err}")
</pallas_src>

<mosaic_0001>
module attributes {stable_mosaic.version = 11 : i64} {
  func.func @_hole_fill_kernel(%arg0: i32, %arg1: memref<1x24x128xf32, #tpu.memory_space<vmem>>, %arg2: memref<1x24x128xf32, #tpu.memory_space<vmem>>, %arg3: memref<1xi32, #tpu.memory_space<smem>>) attributes {dimension_semantics = [#tpu.dimension_semantics<parallel>], iteration_bounds = array<i64: 1>, scalar_prefetch = 0 : i64, scratch_operands = 1 : i64, tpu.core_type = #tpu.core_type<tc>, window_params = [{transform_indices = @transform_0, window_bounds = array<i64: 1, 24, 128>}, {transform_indices = @transform_1, window_bounds = array<i64: 1, 24, 128>}]} {
    %c0 = arith.constant 0 : index
    %c0_0 = arith.constant 0 : index
    %c0_1 = arith.constant 0 : index
    %0 = vector.load %arg1[%c0, %c0_0, %c0_1] : memref<1x24x128xf32, #tpu.memory_space<vmem>>, vector<1x24x128xf32>
    %1 = vector.shape_cast %0 : vector<1x24x128xf32> to vector<24x128xf32>
    %cst = arith.constant 0.000000e+00 : f32
    %2 = vector.broadcast %cst : f32 to vector<24x128xf32>
    %3 = arith.cmpf one, %1, %2 : vector<24x128xf32>
    %4 = tpu.iota {dimensions = array<i32: 0>} : vector<24x128xi32>
    %5 = tpu.iota {dimensions = array<i32: 1>} : vector<24x128xi32>
    %c16_i32 = arith.constant 16 : i32
    %6 = vector.broadcast %c16_i32 : i32 to vector<24x128xi32>
    %7 = arith.cmpi slt, %4, %6 : vector<24x128xi32>
    %c38_i32 = arith.constant 38 : i32
    %8 = vector.broadcast %c38_i32 : i32 to vector<24x128xi32>
    %9 = arith.cmpi slt, %5, %8 : vector<24x128xi32>
    %10 = arith.andi %7, %9 : vector<24x128xi1>
    %c19_i32 = arith.constant 19 : i32
    %c0_i32 = arith.constant 0 : i32
    %11 = arith.cmpi eq, %c19_i32, %c0_i32 : i32
    %c1_i32 = arith.constant 1 : i32
    %12 = arith.select %11, %c1_i32, %c19_i32 : i32
    %13 = vector.broadcast %12 : i32 to vector<24x128xi32>
    %14 = arith.remsi %5, %13 : vector<24x128xi32>
    %c0_i32_2 = arith.constant 0 : i32
    %15 = vector.broadcast %c0_i32_2 : i32 to vector<24x128xi32>
    %16 = arith.cmpi ne, %14, %15 : vector<24x128xi32>
    %c0_i32_3 = arith.constant 0 : i32
    %17 = vector.broadcast %c0_i32_3 : i32 to vector<24x128xi32>
    %18 = arith.cmpi slt, %14, %17 : vector<24x128xi32>
    %c0_i32_4 = arith.constant 0 : i32
    %19 = arith.cmpi slt, %12, %c0_i32_4 : i32
    %20 = vector.broadcast %19 : i1 to vector<24x128xi1>
    %21 = vector.broadcast %20 : vector<24x128xi1> to vector<24x128xi1>
    %22 = arith.xori %18, %21 : vector<24x128xi1>
    %23 = arith.andi %22, %16 : vector<24x128xi1>
    %24 = vector.broadcast %12 : i32 to vector<24x128xi32>
    %25 = arith.addi %14, %24 : vector<24x128xi32>
    %26 = arith.select %23, %25, %14 : vector<24x128xi1>, vector<24x128xi32>
    %c16_i32_5 = arith.constant 16 : i32
    %27 = vector.broadcast %c16_i32_5 : i32 to vector<24x128xi32>
    %28 = arith.cmpi slt, %26, %27 : vector<24x128xi32>
    %29 = arith.andi %10, %28 : vector<24x128xi1>
    %30 = arith.extui %29 : vector<24x128xi1> to vector<24x128xi32>
    %31 = arith.sitofp %30 : vector<24x128xi32> to vector<24x128xf32>
    %cst_6 = arith.constant 0.342631519 : f32
    %32 = vector.broadcast %cst_6 : f32 to vector<24x128xf32>
    %33 = arith.mulf %31, %32 : vector<24x128xf32>
    %c1_i32_7 = arith.constant 1 : i32
    %34 = tpu.dynamic_rotate %31 by %c1_i32_7 dim 1 : vector<24x128xf32>, i32 -> vector<24x128xf32>
    %c127_i32 = arith.constant 127 : i32
    %35 = tpu.dynamic_rotate %31 by %c127_i32 dim 1 : vector<24x128xf32>, i32 -> vector<24x128xf32>
    %36 = arith.addf %34, %35 : vector<24x128xf32>
    %cst_8 = arith.constant 0.237296075 : f32
    %37 = vector.broadcast %cst_8 : f32 to vector<24x128xf32>
    %38 = arith.mulf %37, %36 : vector<24x128xf32>
    %39 = arith.addf %33, %38 : vector<24x128xf32>
    %c2_i32 = arith.constant 2 : i32
    %40 = tpu.dynamic_rotate %31 by %c2_i32 dim 1 : vector<24x128xf32>, i32 -> vector<24x128xf32>
    %c126_i32 = arith.constant 126 : i32
    %41 = tpu.dynamic_rotate %31 by %c126_i32 dim 1 : vector<24x128xf32>, i32 -> vector<24x128xf32>
    %42 = arith.addf %40, %41 : vector<24x128xf32>
    %cst_9 = arith.constant 0.0788279623 : f32
    %43 = vector.broadcast %cst_9 : f32 to vector<24x128xf32>
    %44 = arith.mulf %43, %42 : vector<24x128xf32>
    %45 = arith.addf %39, %44 : vector<24x128xf32>
    %c3_i32 = arith.constant 3 : i32
    %46 = tpu.dynamic_rotate %31 by %c3_i32 dim 1 : vector<24x128xf32>, i32 -> vector<24x128xf32>
    %c125_i32 = arith.constant 125 : i32
    %47 = tpu.dynamic_rotate %31 by %c125_i32 dim 1 : vector<24x128xf32>, i32 -> vector<24x128xf32>
    %48 = arith.addf %46, %47 : vector<24x128xf32>
    %cst_10 = arith.constant 0.0125602009 : f32
    %49 = vector.broadcast %cst_10 : f32 to vector<24x128xf32>
    %50 = arith.mulf %49, %48 : vector<24x128xf32>
    %51 = arith.addf %45, %50 : vector<24x128xf32>
    %cst_11 = arith.constant 0.342631519 : f32
    %52 = vector.broadcast %cst_11 : f32 to vector<24x128xf32>
    %53 = arith.mulf %51, %52 : vector<24x128xf32>
    %c1_i32_12 = arith.constant 1 : i32
    %54 = tpu.dynamic_rotate %51 by %c1_i32_12 dim 0 : vector<24x128xf32>, i32 -> vector<24x128xf32>
    %c23_i32 = arith.constant 23 : i32
    %55 = tpu.dynamic_rotate %51 by %c23_i32 dim 0 : vector<24x128xf32>, i32 -> vector<24x128xf32>
    %56 = arith.addf %54, %55 : vector<24x128xf32>
    %cst_13 = arith.constant 0.237296075 : f32
    %57 = vector.broadcast %cst_13 : f32 to vector<24x128xf32>
    %58 = arith.mulf %57, %56 : vector<24x128xf32>
    %59 = arith.addf %53, %58 : vector<24x128xf32>
    %c2_i32_14 = arith.constant 2 : i32
    %60 = tpu.dynamic_rotate %51 by %c2_i32_14 dim 0 : vector<24x128xf32>, i32 -> vector<24x128xf32>
    %c22_i32 = arith.constant 22 : i32
    %61 = tpu.dynamic_rotate %51 by %c22_i32 dim 0 : vector<24x128xf32>, i32 -> vector<24x128xf32>
    %62 = arith.addf %60, %61 : vector<24x128xf32>
    %cst_15 = arith.constant 0.0788279623 : f32
    %63 = vector.broadcast %cst_15 : f32 to vector<24x128xf32>
    %64 = arith.mulf %63, %62 : vector<24x128xf32>
    %65 = arith.addf %59, %64 : vector<24x128xf32>
    %c3_i32_16 = arith.constant 3 : i32
    %66 = tpu.dynamic_rotate %51 by %c3_i32_16 dim 0 : vector<24x128xf32>, i32 -> vector<24x128xf32>
    %c21_i32 = arith.constant 21 : i32
    %67 = tpu.dynamic_rotate %51 by %c21_i32 dim 0 : vector<24x128xf32>, i32 -> vector<24x128xf32>
    %68 = arith.addf %66, %67 : vector<24x128xf32>
    %cst_17 = arith.constant 0.0125602009 : f32
    %69 = vector.broadcast %cst_17 : f32 to vector<24x128xf32>
    %70 = arith.mulf %69, %68 : vector<24x128xf32>
    %71 = arith.addf %65, %70 : vector<24x128xf32>
    %cst_18 = arith.constant 9.99999996E-13 : f32
    %72 = vector.broadcast %cst_18 : f32 to vector<24x128xf32>
    %73 = arith.maximumf %71, %72 : vector<24x128xf32>
    %74 = arith.divf %31, %73 : vector<24x128xf32>
    %c0_19 = arith.constant 0 : index
    %c0_20 = arith.constant 0 : index
    %c0_21 = arith.constant 0 : index
    %75 = vector.load %arg2[%c0_19, %c0_20, %c0_21] : memref<1x24x128xf32, #tpu.memory_space<vmem>>, vector<1x24x128xf32>
    %76 = vector.shape_cast %75 : vector<1x24x128xf32> to vector<24x128xf32>
    %77 = vector.shape_cast %1 : vector<24x128xf32> to vector<1x24x128xf32>
    tpu.vector_store %arg2[%c0_19, %c0_20, %c0_21], %77 {strides = array<i32>} : memref<1x24x128xf32, #tpu.memory_space<vmem>>, vector<1x24x128xf32>,
    %c0_i32_22 = arith.constant 0 : i32
    %c0_23 = arith.constant 0 : index
    %78 = memref.load %arg3[%c0_23] : memref<1xi32, #tpu.memory_space<smem>>
    memref.store %c0_i32_22, %arg3[%c0_23] : memref<1xi32, #tpu.memory_space<smem>>
    %c0_i32_24 = arith.constant 0 : i32
    %c50_i32 = arith.constant 50 : i32
    %79 = arith.addi %c0_i32_24, %c50_i32 : i32
    %c1_i32_25 = arith.constant 1 : i32
    scf.for %arg4 = %c0_i32_24 to %79 step %c1_i32_25  : i32 {
      %c0_26 = arith.constant 0 : index
      %80 = memref.load %arg3[%c0_26] : memref<1xi32, #tpu.memory_space<smem>>
      %c0_i32_27 = arith.constant 0 : i32
      %81 = arith.cmpi eq, %80, %c0_i32_27 : i32
      %82 = arith.extui %81 : i1 to i32
      %c0_i32_28 = arith.constant 0 : i32
      %83 = arith.cmpi ne, %82, %c0_i32_28 : i32
      scf.if %83 {
        %c0_31 = arith.constant 0 : index
        %c0_32 = arith.constant 0 : index
        %c0_33 = arith.constant 0 : index
        %87 = vector.load %arg2[%c0_31, %c0_32, %c0_33] : memref<1x24x128xf32, #tpu.memory_space<vmem>>, vector<1x24x128xf32>
        %88 = vector.shape_cast %87 : vector<1x24x128xf32> to vector<24x128xf32>
        %cst_34 = arith.constant 0.000000e+00 : f32
        %89 = vector.broadcast %cst_34 : f32 to vector<24x128xf32>
        %90 = arith.cmpf one, %88, %89 : vector<24x128xf32>
        %91 = arith.extui %90 : vector<24x128xi1> to vector<24x128xi32>
        %92 = arith.sitofp %91 : vector<24x128xi32> to vector<24x128xf32>
        %cst_35 = arith.constant 0.342631519 : f32
        %93 = vector.broadcast %cst_35 : f32 to vector<24x128xf32>
        %94 = arith.mulf %88, %93 : vector<24x128xf32>
        %c1_i32_36 = arith.constant 1 : i32
        %95 = tpu.dynamic_rotate %88 by %c1_i32_36 dim 1 : vector<24x128xf32>, i32 -> vector<24x128xf32>
        %c127_i32_37 = arith.constant 127 : i32
        %96 = tpu.dynamic_rotate %88 by %c127_i32_37 dim 1 : vector<24x128xf32>, i32 -> vector<24x128xf32>
        %97 = arith.addf %95, %96 : vector<24x128xf32>
        %cst_38 = arith.constant 0.237296075 : f32
        %98 = vector.broadcast %cst_38 : f32 to vector<24x128xf32>
        %99 = arith.mulf %98, %97 : vector<24x128xf32>
        %100 = arith.addf %94, %99 : vector<24x128xf32>
        %c2_i32_39 = arith.constant 2 : i32
        %101 = tpu.dynamic_rotate %88 by %c2_i32_39 dim 1 : vector<24x128xf32>, i32 -> vector<24x128xf32>
        %c126_i32_40 = arith.constant 126 : i32
        %102 = tpu.dynamic_rotate %88 by %c126_i32_40 dim 1 : vector<24x128xf32>, i32 -> vector<24x128xf32>
        %103 = arith.addf %101, %102 : vector<24x128xf32>
        %cst_41 = arith.constant 0.0788279623 : f32
        %104 = vector.broadcast %cst_41 : f32 to vector<24x128xf32>
        %105 = arith.mulf %104, %103 : vector<24x128xf32>
        %106 = arith.addf %100, %105 : vector<24x128xf32>
        %c3_i32_42 = arith.constant 3 : i32
        %107 = tpu.dynamic_rotate %88 by %c3_i32_42 dim 1 : vector<24x128xf32>, i32 -> vector<24x128xf32>
        %c125_i32_43 = arith.constant 125 : i32
        %108 = tpu.dynamic_rotate %88 by %c125_i32_43 dim 1 : vector<24x128xf32>, i32 -> vector<24x128xf32>
        %109 = arith.addf %107, %108 : vector<24x128xf32>
        %cst_44 = arith.constant 0.0125602009 : f32
        %110 = vector.broadcast %cst_44 : f32 to vector<24x128xf32>
        %111 = arith.mulf %110, %109 : vector<24x128xf32>
        %112 = arith.addf %106, %111 : vector<24x128xf32>
        %cst_45 = arith.constant 0.342631519 : f32
        %113 = vector.broadcast %cst_45 : f32 to vector<24x128xf32>
        %114 = arith.mulf %112, %113 : vector<24x128xf32>
        %c1_i32_46 = arith.constant 1 : i32
        %115 = tpu.dynamic_rotate %112 by %c1_i32_46 dim 0 : vector<24x128xf32>, i32 -> vector<24x128xf32>
        %c23_i32_47 = arith.constant 23 : i32
        %116 = tpu.dynamic_rotate %112 by %c23_i32_47 dim 0 : vector<24x128xf32>, i32 -> vector<24x128xf32>
        %117 = arith.addf %115, %116 : vector<24x128xf32>
        %cst_48 = arith.constant 0.237296075 : f32
        %118 = vector.broadcast %cst_48 : f32 to vector<24x128xf32>
        %119 = arith.mulf %118, %117 : vector<24x128xf32>
        %120 = arith.addf %114, %119 : vector<24x128xf32>
        %c2_i32_49 = arith.constant 2 : i32
        %121 = tpu.dynamic_rotate %112 by %c2_i32_49 dim 0 : vector<24x128xf32>, i32 -> vector<24x128xf32>
        %c22_i32_50 = arith.constant 22 : i32
        %122 = tpu.dynamic_rotate %112 by %c22_i32_50 dim 0 : vector<24x128xf32>, i32 -> vector<24x128xf32>
        %123 = arith.addf %121, %122 : vector<24x128xf32>
        %cst_51 = arith.constant 0.0788279623 : f32
        %124 = vector.broadcast %cst_51 : f32 to vector<24x128xf32>
        %125 = arith.mulf %124, %123 : vector<24x128xf32>
        %126 = arith.addf %120, %125 : vector<24x128xf32>
        %c3_i32_52 = arith.constant 3 : i32
        %127 = tpu.dynamic_rotate %112 by %c3_i32_52 dim 0 : vector<24x128xf32>, i32 -> vector<24x128xf32>
        %c21_i32_53 = arith.constant 21 : i32
        %128 = tpu.dynamic_rotate %112 by %c21_i32_53 dim 0 : vector<24x128xf32>, i32 -> vector<24x128xf32>
        %129 = arith.addf %127, %128 : vector<24x128xf32>
        %cst_54 = arith.constant 0.0125602009 : f32
        %130 = vector.broadcast %cst_54 : f32 to vector<24x128xf32>
        %131 = arith.mulf %130, %129 : vector<24x128xf32>
        %132 = arith.addf %126, %131 : vector<24x128xf32>
        %cst_55 = arith.constant 0.342631519 : f32
        %133 = vector.broadcast %cst_55 : f32 to vector<24x128xf32>
        %134 = arith.mulf %92, %133 : vector<24x128xf32>
        %c1_i32_56 = arith.constant 1 : i32
        %135 = tpu.dynamic_rotate %92 by %c1_i32_56 dim 1 : vector<24x128xf32>, i32 -> vector<24x128xf32>
        %c127_i32_57 = arith.constant 127 : i32
        %136 = tpu.dynamic_rotate %92 by %c127_i32_57 dim 1 : vector<24x128xf32>, i32 -> vector<24x128xf32>
        %137 = arith.addf %135, %136 : vector<24x128xf32>
        %cst_58 = arith.constant 0.237296075 : f32
        %138 = vector.broadcast %cst_58 : f32 to vector<24x128xf32>
        %139 = arith.mulf %138, %137 : vector<24x128xf32>
        %140 = arith.addf %134, %139 : vector<24x128xf32>
        %c2_i32_59 = arith.constant 2 : i32
        %141 = tpu.dynamic_rotate %92 by %c2_i32_59 dim 1 : vector<24x128xf32>, i32 -> vector<24x128xf32>
        %c126_i32_60 = arith.constant 126 : i32
        %142 = tpu.dynamic_rotate %92 by %c126_i32_60 dim 1 : vector<24x128xf32>, i32 -> vector<24x128xf32>
        %143 = arith.addf %141, %142 : vector<24x128xf32>
        %cst_61 = arith.constant 0.0788279623 : f32
        %144 = vector.broadcast %cst_61 : f32 to vector<24x128xf32>
        %145 = arith.mulf %144, %143 : vector<24x128xf32>
        %146 = arith.addf %140, %145 : vector<24x128xf32>
        %c3_i32_62 = arith.constant 3 : i32
        %147 = tpu.dynamic_rotate %92 by %c3_i32_62 dim 1 : vector<24x128xf32>, i32 -> vector<24x128xf32>
        %c125_i32_63 = arith.constant 125 : i32
        %148 = tpu.dynamic_rotate %92 by %c125_i32_63 dim 1 : vector<24x128xf32>, i32 -> vector<24x128xf32>
        %149 = arith.addf %147, %148 : vector<24x128xf32>
        %cst_64 = arith.constant 0.0125602009 : f32
        %150 = vector.broadcast %cst_64 : f32 to vector<24x128xf32>
        %151 = arith.mulf %150, %149 : vector<24x128xf32>
        %152 = arith.addf %146, %151 : vector<24x128xf32>
        %cst_65 = arith.constant 0.342631519 : f32
        %153 = vector.broadcast %cst_65 : f32 to vector<24x128xf32>
        %154 = arith.mulf %152, %153 : vector<24x128xf32>
        %c1_i32_66 = arith.constant 1 : i32
        %155 = tpu.dynamic_rotate %152 by %c1_i32_66 dim 0 : vector<24x128xf32>, i32 -> vector<24x128xf32>
        %c23_i32_67 = arith.constant 23 : i32
        %156 = tpu.dynamic_rotate %152 by %c23_i32_67 dim 0 : vector<24x128xf32>, i32 -> vector<24x128xf32>
        %157 = arith.addf %155, %156 : vector<24x128xf32>
        %cst_68 = arith.constant 0.237296075 : f32
        %158 = vector.broadcast %cst_68 : f32 to vector<24x128xf32>
        %159 = arith.mulf %158, %157 : vector<24x128xf32>
        %160 = arith.addf %154, %159 : vector<24x128xf32>
        %c2_i32_69 = arith.constant 2 : i32
        %161 = tpu.dynamic_rotate %152 by %c2_i32_69 dim 0 : vector<24x128xf32>, i32 -> vector<24x128xf32>
        %c22_i32_70 = arith.constant 22 : i32
        %162 = tpu.dynamic_rotate %152 by %c22_i32_70 dim 0 : vector<24x128xf32>, i32 -> vector<24x128xf32>
        %163 = arith.addf %161, %162 : vector<24x128xf32>
        %cst_71 = arith.constant 0.0788279623 : f32
        %164 = vector.broadcast %cst_71 : f32 to vector<24x128xf32>
        %165 = arith.mulf %164, %163 : vector<24x128xf32>
        %166 = arith.addf %160, %165 : vector<24x128xf32>
        %c3_i32_72 = arith.constant 3 : i32
        %167 = tpu.dynamic_rotate %152 by %c3_i32_72 dim 0 : vector<24x128xf32>, i32 -> vector<24x128xf32>
        %c21_i32_73 = arith.constant 21 : i32
        %168 = tpu.dynamic_rotate %152 by %c21_i32_73 dim 0 : vector<24x128xf32>, i32 -> vector<24x128xf32>
        %169 = arith.addf %167, %168 : vector<24x128xf32>
        %cst_74 = arith.constant 0.0125602009 : f32
        %170 = vector.broadcast %cst_74 : f32 to vector<24x128xf32>
        %171 = arith.mulf %170, %169 : vector<24x128xf32>
        %172 = arith.addf %166, %171 : vector<24x128xf32>
        %cst_75 = arith.constant 9.99999996E-13 : f32
        %173 = vector.broadcast %cst_75 : f32 to vector<24x128xf32>
        %174 = arith.maximumf %172, %173 : vector<24x128xf32>
        %175 = tpu.reciprocal %174 {approx = true} : vector<24x128xf32> -> vector<24x128xf32>
        %176 = arith.mulf %174, %175 : vector<24x128xf32>
        %cst_76 = arith.constant 2.000000e+00 : f32
        %177 = vector.broadcast %cst_76 : f32 to vector<24x128xf32>
        %178 = arith.subf %177, %176 : vector<24x128xf32>
        %179 = arith.mulf %175, %178 : vector<24x128xf32>
        %180 = arith.mulf %132, %179 : vector<24x128xf32>
        %181 = arith.mulf %180, %31 : vector<24x128xf32>
        %182 = arith.select %3, %1, %181 : vector<24x128xi1>, vector<24x128xf32>
        %c0_77 = arith.constant 0 : index
        %c0_78 = arith.constant 0 : index
        %c0_79 = arith.constant 0 : index
        %183 = vector.load %arg2[%c0_77, %c0_78, %c0_79] : memref<1x24x128xf32, #tpu.memory_space<vmem>>, vector<1x24x128xf32>
        %184 = vector.shape_cast %183 : vector<1x24x128xf32> to vector<24x128xf32>
        %185 = vector.shape_cast %182 : vector<24x128xf32> to vector<1x24x128xf32>
        tpu.vector_store %arg2[%c0_77, %c0_78, %c0_79], %185 {strides = array<i32>} : memref<1x24x128xf32, #tpu.memory_space<vmem>>, vector<1x24x128xf32>,
        %cst_80 = arith.constant 0.000000e+00 : f32
        %186 = vector.broadcast %cst_80 : f32 to vector<24x128xf32>
        %187 = arith.cmpf oeq, %182, %186 : vector<24x128xf32>
        %cst_81 = arith.constant 1.000000e+00 : f32
        %cst_82 = arith.constant 0.000000e+00 : f32
        %188 = vector.broadcast %cst_81 : f32 to vector<24x128xf32>
        %189 = vector.broadcast %cst_82 : f32 to vector<24x128xf32>
        %190 = arith.select %187, %188, %189 : vector<24x128xi1>, vector<24x128xf32>
        %191 = arith.mulf %31, %190 : vector<24x128xf32>
        %192 = vector.shape_cast %191 : vector<24x128xf32> to vector<1x24x128xf32>
        %cst_83 = arith.constant dense<0.000000e+00> : vector<1xf32>
        %193 = vector.multi_reduction <add>, %192, %cst_83 [1, 2] : vector<1x24x128xf32> to vector<1xf32>
        %194 = vector.shape_cast %193 : vector<1xf32> to vector<1x1x1xf32>
        %195 = vector.extract %194[0, 0, 0] : f32 from vector<1x1x1xf32>
        %cst_84 = arith.constant 0.000000e+00 : f32
        %196 = arith.cmpf oeq, %195, %cst_84 : f32
        %197 = arith.extui %196 : i1 to i32
        %c0_85 = arith.constant 0 : index
        %198 = memref.load %arg3[%c0_85] : memref<1xi32, #tpu.memory_space<smem>>
        memref.store %197, %arg3[%c0_85] : memref<1xi32, #tpu.memory_space<smem>>
      } else {
      }
      %c0_i32_29 = arith.constant 0 : i32
      %84 = arith.cmpi ne, %80, %c0_i32_29 : i32
      %85 = arith.extui %84 : i1 to i32
      %c0_i32_30 = arith.constant 0 : i32
      %86 = arith.cmpi ne, %85, %c0_i32_30 : i32
      scf.if %86 {
        %c0_31 = arith.constant 0 : index
        %c0_32 = arith.constant 0 : index
        %c0_33 = arith.constant 0 : index
        %87 = vector.load %arg2[%c0_31, %c0_32, %c0_33] : memref<1x24x128xf32, #tpu.memory_space<vmem>>, vector<1x24x128xf32>
        %88 = vector.shape_cast %87 : vector<1x24x128xf32> to vector<24x128xf32>
        %cst_34 = arith.constant 0.342631519 : f32
        %89 = vector.broadcast %cst_34 : f32 to vector<24x128xf32>
        %90 = arith.mulf %88, %89 : vector<24x128xf32>
        %c1_i32_35 = arith.constant 1 : i32
        %91 = tpu.dynamic_rotate %88 by %c1_i32_35 dim 1 : vector<24x128xf32>, i32 -> vector<24x128xf32>
        %c127_i32_36 = arith.constant 127 : i32
        %92 = tpu.dynamic_rotate %88 by %c127_i32_36 dim 1 : vector<24x128xf32>, i32 -> vector<24x128xf32>
        %93 = arith.addf %91, %92 : vector<24x128xf32>
        %cst_37 = arith.constant 0.237296075 : f32
        %94 = vector.broadcast %cst_37 : f32 to vector<24x128xf32>
        %95 = arith.mulf %94, %93 : vector<24x128xf32>
        %96 = arith.addf %90, %95 : vector<24x128xf32>
        %c2_i32_38 = arith.constant 2 : i32
        %97 = tpu.dynamic_rotate %88 by %c2_i32_38 dim 1 : vector<24x128xf32>, i32 -> vector<24x128xf32>
        %c126_i32_39 = arith.constant 126 : i32
        %98 = tpu.dynamic_rotate %88 by %c126_i32_39 dim 1 : vector<24x128xf32>, i32 -> vector<24x128xf32>
        %99 = arith.addf %97, %98 : vector<24x128xf32>
        %cst_40 = arith.constant 0.0788279623 : f32
        %100 = vector.broadcast %cst_40 : f32 to vector<24x128xf32>
        %101 = arith.mulf %100, %99 : vector<24x128xf32>
        %102 = arith.addf %96, %101 : vector<24x128xf32>
        %c3_i32_41 = arith.constant 3 : i32
        %103 = tpu.dynamic_rotate %88 by %c3_i32_41 dim 1 : vector<24x128xf32>, i32 -> vector<24x128xf32>
        %c125_i32_42 = arith.constant 125 : i32
        %104 = tpu.dynamic_rotate %88 by %c125_i32_42 dim 1 : vector<24x128xf32>, i32 -> vector<24x128xf32>
        %105 = arith.addf %103, %104 : vector<24x128xf32>
        %cst_43 = arith.constant 0.0125602009 : f32
        %106 = vector.broadcast %cst_43 : f32 to vector<24x128xf32>
        %107 = arith.mulf %106, %105 : vector<24x128xf32>
        %108 = arith.addf %102, %107 : vector<24x128xf32>
        %cst_44 = arith.constant 0.342631519 : f32
        %109 = vector.broadcast %cst_44 : f32 to vector<24x128xf32>
        %110 = arith.mulf %108, %109 : vector<24x128xf32>
        %c1_i32_45 = arith.constant 1 : i32
        %111 = tpu.dynamic_rotate %108 by %c1_i32_45 dim 0 : vector<24x128xf32>, i32 -> vector<24x128xf32>
        %c23_i32_46 = arith.constant 23 : i32
        %112 = tpu.dynamic_rotate %108 by %c23_i32_46 dim 0 : vector<24x128xf32>, i32 -> vector<24x128xf32>
        %113 = arith.addf %111, %112 : vector<24x128xf32>
        %cst_47 = arith.constant 0.237296075 : f32
        %114 = vector.broadcast %cst_47 : f32 to vector<24x128xf32>
        %115 = arith.mulf %114, %113 : vector<24x128xf32>
        %116 = arith.addf %110, %115 : vector<24x128xf32>
        %c2_i32_48 = arith.constant 2 : i32
        %117 = tpu.dynamic_rotate %108 by %c2_i32_48 dim 0 : vector<24x128xf32>, i32 -> vector<24x128xf32>
        %c22_i32_49 = arith.constant 22 : i32
        %118 = tpu.dynamic_rotate %108 by %c22_i32_49 dim 0 : vector<24x128xf32>, i32 -> vector<24x128xf32>
        %119 = arith.addf %117, %118 : vector<24x128xf32>
        %cst_50 = arith.constant 0.0788279623 : f32
        %120 = vector.broadcast %cst_50 : f32 to vector<24x128xf32>
        %121 = arith.mulf %120, %119 : vector<24x128xf32>
        %122 = arith.addf %116, %121 : vector<24x128xf32>
        %c3_i32_51 = arith.constant 3 : i32
        %123 = tpu.dynamic_rotate %108 by %c3_i32_51 dim 0 : vector<24x128xf32>, i32 -> vector<24x128xf32>
        %c21_i32_52 = arith.constant 21 : i32
        %124 = tpu.dynamic_rotate %108 by %c21_i32_52 dim 0 : vector<24x128xf32>, i32 -> vector<24x128xf32>
        %125 = arith.addf %123, %124 : vector<24x128xf32>
        %cst_53 = arith.constant 0.0125602009 : f32
        %126 = vector.broadcast %cst_53 : f32 to vector<24x128xf32>
        %127 = arith.mulf %126, %125 : vector<24x128xf32>
        %128 = arith.addf %122, %127 : vector<24x128xf32>
        %129 = arith.mulf %128, %74 : vector<24x128xf32>
        %130 = arith.select %3, %1, %129 : vector<24x128xi1>, vector<24x128xf32>
        %c0_54 = arith.constant 0 : index
        %c0_55 = arith.constant 0 : index
        %c0_56 = arith.constant 0 : index
        %131 = vector.load %arg2[%c0_54, %c0_55, %c0_56] : memref<1x24x128xf32, #tpu.memory_space<vmem>>, vector<1x24x128xf32>
        %132 = vector.shape_cast %131 : vector<1x24x128xf32> to vector<24x128xf32>
        %133 = vector.shape_cast %130 : vector<24x128xf32> to vector<1x24x128xf32>
        tpu.vector_store %arg2[%c0_54, %c0_55, %c0_56], %133 {strides = array<i32>} : memref<1x24x128xf32, #tpu.memory_space<vmem>>, vector<1x24x128xf32>,
      } else {
      }
    }
    return
  }
  func.func @transform_0(%arg0: i32) -> (i32, i32, i32) {
    %c0_i32 = arith.constant 0 : i32
    %c0_i32_0 = arith.constant 0 : i32
    %c0_i32_1 = arith.constant 0 : i32
    return %arg0, %c0_i32, %c0_i32_0 : i32, i32, i32
  }
  func.func @transform_1(%arg0: i32) -> (i32, i32, i32) {
    %c0_i32 = arith.constant 0 : i32
    %c0_i32_0 = arith.constant 0 : i32
    %c0_i32_1 = arith.constant 0 : i32
    return %arg0, %c0_i32, %c0_i32_0 : i32, i32, i32
  }
}

</mosaic_0001>

<llo_original>
// kernel: tpu_custom_call.1
$region0: #{tpu_custom_call.1}
  #allocation0 [shape = 'u32[]', space=smem, size = 0x4, offset = 0x4, fixed_abs, tag = 'smem constant byte address 0x4 - core index']
  #allocation1 [shape = 'u32[144,128]{1,0:T(1,128)}', space=vmem, size = 0x12000, scoped, tag = 'internal scratch']
  #allocation2 [shape = 's32[1]{0:T(128)}', space=smem, size = 0x200, scoped, tag = 'scratch operand']
  %s0 = inlined_call_operand.hbm [shape: f32[1,24,128], index: 0, kind: input, shape index: {}]
  %s1 = inlined_call_operand.hbm [shape: f32[1,24,128], index: 1, kind: output, shape index: {}]
  %s2 = sld [smem:[#allocation0]]
  $region33: #{tpu_custom_call.1} parent=0
    _
  %s4 = ssub.s32 1, %s2
  %s5 = scalar_select 0, %s4, %s2
  $region1: #{tpu_custom_call.1} parent=0
    #allocation3 [shape = 'u8[12288]{0}', space=vmem, size = 0x3000, scoped, tag = 'input window, operand 0, single buffered']
    #allocation4 [shape = 's32[1]{0}', space=sflag, size = 0x4, scoped, tag = 'scoped memory for tpu_custom_call.1']
    #allocation5 [shape = 's32[1]{0}', space=sflag, size = 0x4, scoped, tag = 'scoped memory for tpu_custom_call.1']
    #allocation6 [shape = 'u8[12288]{0}', space=vmem, size = 0x3000, scoped, tag = 'output window, operand 0, single buffered']
    %6 = vsyncpa [#allocation4], 0
    %7 = vsyncpa [#allocation5], 0
    // Predicated region
    $region2: #{tpu_custom_call.1} parent=1 // pred_check
      _
    $region3: #{tpu_custom_call.1} parent=1 // pred_check_branch
      %9 = sbr.rel (0) target = $region5
    $region4: #{tpu_custom_call.1} parent=1 // pred_region
      %s11 = ssub.s32 384, 384
      %12 = vsyncadd [#allocation4], %s11
      %s13 = sshll.u32 [#allocation3], 4
      %s14 = int_to_ptr.vmem [resolvable:$true] %s13
      %19 = dma.hbm_to_vmem [thread:$0]  %s0, 384, %s14, [#allocation4], 128, 128, 8
    $region5: #{tpu_custom_call.1} parent=1 // pred_fallthru
      _
    // Predicated region
    $region6: #{tpu_custom_call.1} parent=1 // pred_check
      _
    $region7: #{tpu_custom_call.1} parent=1 // pred_check_branch
      %21 = sbr.rel (0) target = $region9
    $region8: #{tpu_custom_call.1} parent=1 // pred_region
      %22 = dma.done [#allocation4], 384
    $region9: #{tpu_custom_call.1} parent=1 // pred_fallthru
      _
    %v23 = vld [vmem:[#allocation3] sm:$0xff]
    %v24 = vld [vmem:[#allocation3 + $0x8] sm:$0xff]
    %v25 = vld [vmem:[#allocation3 + $0x10] sm:$0xff]
    %vm26 = vcmp.ne.f32.partialorder %v23, 0.0
    %vm27 = vcmp.ne.f32.partialorder %v24, 0.0
    %vm28 = vcmp.ne.f32.partialorder %v25, 0.0
    %v29 = vlaneseq
    %v30 = vshrl.u32 %v29, 7
    %v31 = vadd.s32 %v30, 8
    %v32 = vadd.s32 %v30, 16
    %v33 = vlaneseq
    %v34 = vand.u32 %v33, 127
    %vm35 = vcmp.lt.s32.totalorder %v30, 16
    %vm36 = vcmp.lt.s32.totalorder %v31, 16
    %vm37 = vcmp.lt.s32.totalorder %v32, 16
    %vm38 = vcmp.lt.s32.totalorder %v34, 38
    %vm39 = vmand %vm35, %vm38
    %vm40 = vmand %vm36, %vm38
    %vm41 = vmand %vm37, %vm38
    %vm42 = vcmp.lt.s32.totalorder %v34, 0
    %v43 = vsub.s32 0, %v34
    %v44 = vsel %vm42, %v43, %v34
    %v45 = vmul.u32.u64.compose %v44, 3616814565
    %v46 = vextract.low.u32 %v45
    %v47 = vextract.high.u32 %v45
    %vm48 = vc.u32 %v46, 3616814565
    %v49 = vsel %vm48, 1, 0
    %v50 = vadd.s32 %v47, %v49
    %v51 = vshrl.u32 %v50, 4
    %v52 = vmul.u32 %v51, 19
    %v53 = vsub.s32 %v44, %v52
    %v54 = vsub.s32 0, %v53
    %v55 = vsel %vm42, %v54, %v53
    %vm56 = vcmp.ne.s32.totalorder %v55, 0
    %vm57 = vcmp.lt.s32.totalorder %v55, 0
    %vm58 = vmand %vm57, %vm56
    %v59 = vadd.s32 %v55, 19
    %v60 = vsel %vm58, %v59, %v55
    %vm61 = vcmp.lt.s32.totalorder %v60, 16
    %vm62 = vmand %vm39, %vm61
    %vm63 = vmand %vm40, %vm61
    %vm64 = vmand %vm41, %vm61
    %v65 = vsel %vm62, 1, 0
    %v66 = vsel %vm63, 1, 0
    %v67 = vsel %vm64, 1, 0
    %v68 = vcvt.s32.f32 %v65
    %v69 = vcvt.s32.f32 %v66
    %v70 = vcvt.s32.f32 %v67
    %v71 = vmul.f32 %v68, 0.34263152
    %v72 = vmul.f32 %v69, 0.34263152
    %v73 = vmul.f32 %v70, 0.34263152
    %74 = vrot.lane.b32.xlu0 %v68, 1
    %v75 = vpop.permute.xlu0 %74
    %76 = vrot.lane.b32.xlu0 %v69, 1
    %v77 = vpop.permute.xlu0 %76
    %78 = vrot.lane.b32.xlu0 %v70, 1
    %v79 = vpop.permute.xlu0 %78
    %80 = vrot.lane.b32.xlu0 %v68, 127
    %v81 = vpop.permute.xlu0 %80
    %82 = vrot.lane.b32.xlu0 %v69, 127
    %v83 = vpop.permute.xlu0 %82
    %84 = vrot.lane.b32.xlu0 %v70, 127
    %v85 = vpop.permute.xlu0 %84
    %v86 = vadd.f32 %v75, %v81
    %v87 = vadd.f32 %v77, %v83
    %v88 = vadd.f32 %v79, %v85
    %v89 = vmul.f32 %v86, 0.23729607
    %v90 = vmul.f32 %v87, 0.23729607
    %v91 = vmul.f32 %v88, 0.23729607
    %v92 = vadd.f32 %v71, %v89
    %v93 = vadd.f32 %v72, %v90
    %v94 = vadd.f32 %v73, %v91
    %95 = vrot.lane.b32.xlu0 %v68, 2
    %v96 = vpop.permute.xlu0 %95
    %97 = vrot.lane.b32.xlu0 %v69, 2
    %v98 = vpop.permute.xlu0 %97
    %99 = vrot.lane.b32.xlu0 %v70, 2
    %v100 = vpop.permute.xlu0 %99
    %101 = vrot.lane.b32.xlu0 %v68, 126
    %v102 = vpop.permute.xlu0 %101
    %103 = vrot.lane.b32.xlu0 %v69, 126
    %v104 = vpop.permute.xlu0 %103
    %105 = vrot.lane.b32.xlu0 %v70, 126
    %v106 = vpop.permute.xlu0 %105
    %v107 = vadd.f32 %v96, %v102
    %v108 = vadd.f32 %v98, %v104
    %v109 = vadd.f32 %v100, %v106
    %v110 = vmul.f32 %v107, 0.07882796
    %v111 = vmul.f32 %v108, 0.07882796
    %v112 = vmul.f32 %v109, 0.07882796
    %v113 = vadd.f32 %v92, %v110
    %v114 = vadd.f32 %v93, %v111
    %v115 = vadd.f32 %v94, %v112
    %116 = vrot.lane.b32.xlu0 %v68, 3
    %v117 = vpop.permute.xlu0 %116
    %118 = vrot.lane.b32.xlu0 %v69, 3
    %v119 = vpop.permute.xlu0 %118
    %120 = vrot.lane.b32.xlu0 %v70, 3
    %v121 = vpop.permute.xlu0 %120
    %122 = vrot.lane.b32.xlu0 %v68, 125
    %v123 = vpop.permute.xlu0 %122
    %124 = vrot.lane.b32.xlu0 %v69, 125
    %v125 = vpop.permute.xlu0 %124
    %126 = vrot.lane.b32.xlu0 %v70, 125
    %v127 = vpop.permute.xlu0 %126
    %v128 = vadd.f32 %v117, %v123
    %v129 = vadd.f32 %v119, %v125
    %v130 = vadd.f32 %v121, %v127
    %v131 = vmul.f32 %v128, 0.012560201
    %v132 = vmul.f32 %v129, 0.012560201
    %v133 = vmul.f32 %v130, 0.012560201
    %v134 = vadd.f32 %v113, %v131
    %v135 = vadd.f32 %v114, %v132
    %v136 = vadd.f32 %v115, %v133
    %v137 = vmul.f32 %v134, 0.34263152
    %v138 = vmul.f32 %v135, 0.34263152
    %v139 = vmul.f32 %v136, 0.34263152
    %v140 = vrot.slane %v134, 7
    %v141 = vrot.slane %v135, 7
    %v142 = vrot.slane %v136, 7
    %vm143 = vcmp.lt.s32.totalorder %v30, 1
    %v144 = vsel %vm143, %v141, %v142
    %v145 = vsel %vm143, %v140, %v141
    %v146 = vsel %vm143, %v142, %v140
    %v147 = vrot.slane %v134, 1
    %v148 = vrot.slane %v135, 1
    %v149 = vrot.slane %v136, 1
    %vm150 = vcmp.lt.s32.totalorder %v30, 7
    %v151 = vsel %vm150, %v148, %v149
    %v152 = vsel %vm150, %v147, %v148
    %v153 = vsel %vm150, %v149, %v147
    %v154 = vadd.f32 %v146, %v152
    %v155 = vadd.f32 %v145, %v151
    %v156 = vadd.f32 %v144, %v153
    %v157 = vmul.f32 %v154, 0.23729607
    %v158 = vmul.f32 %v155, 0.23729607
    %v159 = vmul.f32 %v156, 0.23729607
    %v160 = vadd.f32 %v137, %v157
    %v161 = vadd.f32 %v138, %v158
    %v162 = vadd.f32 %v139, %v159
    %v163 = vrot.slane %v134, 6
    %v164 = vrot.slane %v135, 6
    %v165 = vrot.slane %v136, 6
    %vm166 = vcmp.lt.s32.totalorder %v30, 2
    %v167 = vsel %vm166, %v164, %v165
    %v168 = vsel %vm166, %v163, %v164
    %v169 = vsel %vm166, %v165, %v163
    %v170 = vrot.slane %v134, 2
    %v171 = vrot.slane %v135, 2
    %v172 = vrot.slane %v136, 2
    %vm173 = vcmp.lt.s32.totalorder %v30, 6
    %v174 = vsel %vm173, %v171, %v172
    %v175 = vsel %vm173, %v170, %v171
    %v176 = vsel %vm173, %v172, %v170
    %v177 = vadd.f32 %v169, %v175
    %v178 = vadd.f32 %v168, %v174
    %v179 = vadd.f32 %v167, %v176
    %v180 = vmul.f32 %v177, 0.07882796
    %v181 = vmul.f32 %v178, 0.07882796
    %v182 = vmul.f32 %v179, 0.07882796
    %v183 = vadd.f32 %v160, %v180
    %v184 = vadd.f32 %v161, %v181
    %v185 = vadd.f32 %v162, %v182
    %v186 = vrot.slane %v134, 5
    %v187 = vrot.slane %v135, 5
    %v188 = vrot.slane %v136, 5
    %vm189 = vcmp.lt.s32.totalorder %v30, 3
    %v190 = vsel %vm189, %v187, %v188
    %v191 = vsel %vm189, %v186, %v187
    %v192 = vsel %vm189, %v188, %v186
    %v193 = vrot.slane %v134, 3
    %v194 = vrot.slane %v135, 3
    %v195 = vrot.slane %v136, 3
    %vm196 = vcmp.lt.s32.totalorder %v30, 5
    %v197 = vsel %vm196, %v194, %v195
    %v198 = vsel %vm196, %v193, %v194
    %v199 = vsel %vm196, %v195, %v193
    %v200 = vadd.f32 %v192, %v198
    %v201 = vadd.f32 %v191, %v197
    %v202 = vadd.f32 %v190, %v199
    %v203 = vmul.f32 %v200, 0.012560201
    %v204 = vmul.f32 %v201, 0.012560201
    %v205 = vmul.f32 %v202, 0.012560201
    %v206 = vadd.f32 %v183, %v203
    %v207 = vadd.f32 %v184, %v204
    %v208 = vadd.f32 %v185, %v205
    %v209 = vmax.f32 %v206, 1e-12
    %v210 = vmax.f32 %v207, 1e-12
    %v211 = vmax.f32 %v208, 1e-12
    %v212 = vrcp.pop %v209
    %v213 = vmul.f32 %v68, %v212
    %v214 = vrcp.pop %v210
    %v215 = vmul.f32 %v69, %v214
    %v216 = vrcp.pop %v211
    %v217 = vmul.f32 %v70, %v216
    %218 = vst [vmem:[#allocation6] sm:$0xff] %v23
    %219 = vst [vmem:[#allocation6 + $0x8] sm:$0xff] %v24
    %220 = vst [vmem:[#allocation6 + $0x10] sm:$0xff] %v25
    %s221 = scalar_lea.smem [#allocation2], 0
    %222 = sst [smem:[%s221]] 0
    loop: start=0, step=1, limit=50
    $region10: #{tpu_custom_call.1} parent=1 // loop_pre_header
      _
    $region11: #{tpu_custom_call.1} parent=1 // loop_header
      %s224 = sphi 0, %s228
      %p225 = scmp.ge.s32.totalorder %s224, 50
    $region12: #{tpu_custom_call.1} parent=1 // loop_header_branch
      %227 = sbr.rel (%p225) target = $region16
    $region13: #{tpu_custom_call.1} parent=1 // loop_body
      %s229 = sld [smem:[#allocation2]]
      %p230 = scmp.eq.s32.totalorder %s229, 0
      // Predicated region
      $region17: #{tpu_custom_call.1} parent=13 // pred_check
        %p231 = pneg %p230
      $region18: #{tpu_custom_call.1} parent=13 // pred_check_branch
        %233 = sbr.rel (%p231) target = $region20
      $region19: #{tpu_custom_call.1} parent=13 // pred_region
        %v234 = vld [vmem:[#allocation6] sm:$0xff]
        %v235 = vld [vmem:[#allocation6 + $0x8] sm:$0xff]
        %v236 = vld [vmem:[#allocation6 + $0x10] sm:$0xff]
        %vm237 = vcmp.ne.f32.partialorder %v234, 0.0
        %vm238 = vcmp.ne.f32.partialorder %v235, 0.0
        %vm239 = vcmp.ne.f32.partialorder %v236, 0.0
        %v240 = vsel %vm237, 1, 0
        %v241 = vsel %vm238, 1, 0
        %v242 = vsel %vm239, 1, 0
        %v243 = vcvt.s32.f32 %v240
        %v244 = vcvt.s32.f32 %v241
        %v245 = vcvt.s32.f32 %v242
        %v246 = vmul.f32 %v234, 0.34263152
        %v247 = vmul.f32 %v235, 0.34263152
        %v248 = vmul.f32 %v236, 0.34263152
        %249 = vrot.lane.b32.xlu0 %v234, 1
        %v250 = vpop.permute.xlu0 %249
        %251 = vrot.lane.b32.xlu0 %v235, 1
        %v252 = vpop.permute.xlu0 %251
        %253 = vrot.lane.b32.xlu0 %v236, 1
        %v254 = vpop.permute.xlu0 %253
        %255 = vrot.lane.b32.xlu0 %v234, 127
        %v256 = vpop.permute.xlu0 %255
        %257 = vrot.lane.b32.xlu0 %v235, 127
        %v258 = vpop.permute.xlu0 %257
        %259 = vrot.lane.b32.xlu0 %v236, 127
        %v260 = vpop.permute.xlu0 %259
        %v261 = vadd.f32 %v250, %v256
        %v262 = vadd.f32 %v252, %v258
        %v263 = vadd.f32 %v254, %v260
        %v264 = vmul.f32 %v261, 0.23729607
        %v265 = vmul.f32 %v262, 0.23729607
        %v266 = vmul.f32 %v263, 0.23729607
        %v267 = vadd.f32 %v246, %v264
        %v268 = vadd.f32 %v247, %v265
        %v269 = vadd.f32 %v248, %v266
        %270 = vrot.lane.b32.xlu0 %v234, 2
        %v271 = vpop.permute.xlu0 %270
        %272 = vrot.lane.b32.xlu0 %v235, 2
        %v273 = vpop.permute.xlu0 %272
        %274 = vrot.lane.b32.xlu0 %v236, 2
        %v275 = vpop.permute.xlu0 %274
        %276 = vrot.lane.b32.xlu0 %v234, 126
        %v277 = vpop.permute.xlu0 %276
        %278 = vrot.lane.b32.xlu0 %v235, 126
        %v279 = vpop.permute.xlu0 %278
        %280 = vrot.lane.b32.xlu0 %v236, 126
        %v281 = vpop.permute.xlu0 %280
        %v282 = vadd.f32 %v271, %v277
        %v283 = vadd.f32 %v273, %v279
        %v284 = vadd.f32 %v275, %v281
        %v285 = vmul.f32 %v282, 0.07882796
        %v286 = vmul.f32 %v283, 0.07882796
        %v287 = vmul.f32 %v284, 0.07882796
        %v288 = vadd.f32 %v267, %v285
        %v289 = vadd.f32 %v268, %v286
        %v290 = vadd.f32 %v269, %v287
        %291 = vrot.lane.b32.xlu0 %v234, 3
        %v292 = vpop.permute.xlu0 %291
        %293 = vrot.lane.b32.xlu0 %v235, 3
        %v294 = vpop.permute.xlu0 %293
        %295 = vrot.lane.b32.xlu0 %v236, 3
        %v296 = vpop.permute.xlu0 %295
        %297 = vrot.lane.b32.xlu0 %v234, 125
        %v298 = vpop.permute.xlu0 %297
        %299 = vrot.lane.b32.xlu0 %v235, 125
        %v300 = vpop.permute.xlu0 %299
        %301 = vrot.lane.b32.xlu0 %v236, 125
        %v302 = vpop.permute.xlu0 %301
        %v303 = vadd.f32 %v292, %v298
        %v304 = vadd.f32 %v294, %v300
        %v305 = vadd.f32 %v296, %v302
        %v306 = vmul.f32 %v303, 0.012560201
        %v307 = vmul.f32 %v304, 0.012560201
        %v308 = vmul.f32 %v305, 0.012560201
        %v309 = vadd.f32 %v288, %v306
        %v310 = vadd.f32 %v289, %v307
        %v311 = vadd.f32 %v290, %v308
        %v312 = vmul.f32 %v309, 0.34263152
        %v313 = vmul.f32 %v310, 0.34263152
        %v314 = vmul.f32 %v311, 0.34263152
        %v315 = vrot.slane %v309, 7
        %v316 = vrot.slane %v310, 7
        %v317 = vrot.slane %v311, 7
        %v318 = vsel %vm143, %v316, %v317
        %v319 = vsel %vm143, %v315, %v316
        %v320 = vsel %vm143, %v317, %v315
        %v321 = vrot.slane %v309, 1
        %v322 = vrot.slane %v310, 1
        %v323 = vrot.slane %v311, 1
        %v324 = vsel %vm150, %v322, %v323
        %v325 = vsel %vm150, %v321, %v322
        %v326 = vsel %vm150, %v323, %v321
        %v327 = vadd.f32 %v320, %v325
        %v328 = vadd.f32 %v319, %v324
        %v329 = vadd.f32 %v318, %v326
        %v330 = vmul.f32 %v327, 0.23729607
        %v331 = vmul.f32 %v328, 0.23729607
        %v332 = vmul.f32 %v329, 0.23729607
        %v333 = vadd.f32 %v312, %v330
        %v334 = vadd.f32 %v313, %v331
        %v335 = vadd.f32 %v314, %v332
        %v336 = vrot.slane %v309, 6
        %v337 = vrot.slane %v310, 6
        %v338 = vrot.slane %v311, 6
        %v339 = vsel %vm166, %v337, %v338
        %v340 = vsel %vm166, %v336, %v337
        %v341 = vsel %vm166, %v338, %v336
        %v342 = vrot.slane %v309, 2
        %v343 = vrot.slane %v310, 2
        %v344 = vrot.slane %v311, 2
        %v345 = vsel %vm173, %v343, %v344
        %v346 = vsel %vm173, %v342, %v343
        %v347 = vsel %vm173, %v344, %v342
        %v348 = vadd.f32 %v341, %v346
        %v349 = vadd.f32 %v340, %v345
        %v350 = vadd.f32 %v339, %v347
        %v351 = vmul.f32 %v348, 0.07882796
        %v352 = vmul.f32 %v349, 0.07882796
        %v353 = vmul.f32 %v350, 0.07882796
        %v354 = vadd.f32 %v333, %v351
        %v355 = vadd.f32 %v334, %v352
        %v356 = vadd.f32 %v335, %v353
        %v357 = vrot.slane %v309, 5
        %v358 = vrot.slane %v310, 5
        %v359 = vrot.slane %v311, 5
        %v360 = vsel %vm189, %v358, %v359
        %v361 = vsel %vm189, %v357, %v358
        %v362 = vsel %vm189, %v359, %v357
        %v363 = vrot.slane %v309, 3
        %v364 = vrot.slane %v310, 3
        %v365 = vrot.slane %v311, 3
        %v366 = vsel %vm196, %v364, %v365
        %v367 = vsel %vm196, %v363, %v364
        %v368 = vsel %vm196, %v365, %v363
        %v369 = vadd.f32 %v362, %v367
        %v370 = vadd.f32 %v361, %v366
        %v371 = vadd.f32 %v360, %v368
        %v372 = vmul.f32 %v369, 0.012560201
        %v373 = vmul.f32 %v370, 0.012560201
        %v374 = vmul.f32 %v371, 0.012560201
        %v375 = vadd.f32 %v354, %v372
        %v376 = vadd.f32 %v355, %v373
        %v377 = vadd.f32 %v356, %v374
        %v378 = vmul.f32 %v243, 0.34263152
        %v379 = vmul.f32 %v244, 0.34263152
        %v380 = vmul.f32 %v245, 0.34263152
        %381 = vrot.lane.b32.xlu0 %v243, 1
        %v382 = vpop.permute.xlu0 %381
        %383 = vrot.lane.b32.xlu0 %v244, 1
        %v384 = vpop.permute.xlu0 %383
        %385 = vrot.lane.b32.xlu0 %v245, 1
        %v386 = vpop.permute.xlu0 %385
        %387 = vrot.lane.b32.xlu0 %v243, 127
        %v388 = vpop.permute.xlu0 %387
        %389 = vrot.lane.b32.xlu0 %v244, 127
        %v390 = vpop.permute.xlu0 %389
        %391 = vrot.lane.b32.xlu0 %v245, 127
        %v392 = vpop.permute.xlu0 %391
        %v393 = vadd.f32 %v382, %v388
        %v394 = vadd.f32 %v384, %v390
        %v395 = vadd.f32 %v386, %v392
        %v396 = vmul.f32 %v393, 0.23729607
        %v397 = vmul.f32 %v394, 0.23729607
        %v398 = vmul.f32 %v395, 0.23729607
        %v399 = vadd.f32 %v378, %v396
        %v400 = vadd.f32 %v379, %v397
        %v401 = vadd.f32 %v380, %v398
        %402 = vrot.lane.b32.xlu0 %v243, 2
        %v403 = vpop.permute.xlu0 %402
        %404 = vrot.lane.b32.xlu0 %v244, 2
        %v405 = vpop.permute.xlu0 %404
        %406 = vrot.lane.b32.xlu0 %v245, 2
        %v407 = vpop.permute.xlu0 %406
        %408 = vrot.lane.b32.xlu0 %v243, 126
        %v409 = vpop.permute.xlu0 %408
        %410 = vrot.lane.b32.xlu0 %v244, 126
        %v411 = vpop.permute.xlu0 %410
        %412 = vrot.lane.b32.xlu0 %v245, 126
        %v413 = vpop.permute.xlu0 %412
        %v414 = vadd.f32 %v403, %v409
        %v415 = vadd.f32 %v405, %v411
        %v416 = vadd.f32 %v407, %v413
        %v417 = vmul.f32 %v414, 0.07882796
        %v418 = vmul.f32 %v415, 0.07882796
        %v419 = vmul.f32 %v416, 0.07882796
        %v420 = vadd.f32 %v399, %v417
        %v421 = vadd.f32 %v400, %v418
        %v422 = vadd.f32 %v401, %v419
        %423 = vrot.lane.b32.xlu0 %v243, 3
        %v424 = vpop.permute.xlu0 %423
        %425 = vrot.lane.b32.xlu0 %v244, 3
        %v426 = vpop.permute.xlu0 %425
        %427 = vrot.lane.b32.xlu0 %v245, 3
        %v428 = vpop.permute.xlu0 %427
        %429 = vrot.lane.b32.xlu0 %v243, 125
        %v430 = vpop.permute.xlu0 %429
        %431 = vrot.lane.b32.xlu0 %v244, 125
        %v432 = vpop.permute.xlu0 %431
        %433 = vrot.lane.b32.xlu0 %v245, 125
        %v434 = vpop.permute.xlu0 %433
        %v435 = vadd.f32 %v424, %v430
        %v436 = vadd.f32 %v426, %v432
        %v437 = vadd.f32 %v428, %v434
        %v438 = vmul.f32 %v435, 0.012560201
        %v439 = vmul.f32 %v436, 0.012560201
        %v440 = vmul.f32 %v437, 0.012560201
        %v441 = vadd.f32 %v420, %v438
        %v442 = vadd.f32 %v421, %v439
        %v443 = vadd.f32 %v422, %v440
        %v444 = vmul.f32 %v441, 0.34263152
        %v445 = vmul.f32 %v442, 0.34263152
        %v446 = vmul.f32 %v443, 0.34263152
        %v447 = vrot.slane %v441, 7
        %v448 = vrot.slane %v442, 7
        %v449 = vrot.slane %v443, 7
        %v450 = vsel %vm143, %v448, %v449
        %v451 = vsel %vm143, %v447, %v448
        %v452 = vsel %vm143, %v449, %v447
        %v453 = vrot.slane %v441, 1
        %v454 = vrot.slane %v442, 1
        %v455 = vrot.slane %v443, 1
        %v456 = vsel %vm150, %v454, %v455
        %v457 = vsel %vm150, %v453, %v454
        %v458 = vsel %vm150, %v455, %v453
        %v459 = vadd.f32 %v452, %v457
        %v460 = vadd.f32 %v451, %v456
        %v461 = vadd.f32 %v450, %v458
        %v462 = vmul.f32 %v459, 0.23729607
        %v463 = vmul.f32 %v460, 0.23729607
        %v464 = vmul.f32 %v461, 0.23729607
        %v465 = vadd.f32 %v444, %v462
        %v466 = vadd.f32 %v445, %v463
        %v467 = vadd.f32 %v446, %v464
        %v468 = vrot.slane %v441, 6
        %v469 = vrot.slane %v442, 6
        %v470 = vrot.slane %v443, 6
        %v471 = vsel %vm166, %v469, %v470
        %v472 = vsel %vm166, %v468, %v469
        %v473 = vsel %vm166, %v470, %v468
        %v474 = vrot.slane %v441, 2
        %v475 = vrot.slane %v442, 2
        %v476 = vrot.slane %v443, 2
        %v477 = vsel %vm173, %v475, %v476
        %v478 = vsel %vm173, %v474, %v475
        %v479 = vsel %vm173, %v476, %v474
        %v480 = vadd.f32 %v473, %v478
        %v481 = vadd.f32 %v472, %v477
        %v482 = vadd.f32 %v471, %v479
        %v483 = vmul.f32 %v480, 0.07882796
        %v484 = vmul.f32 %v481, 0.07882796
        %v485 = vmul.f32 %v482, 0.07882796
        %v486 = vadd.f32 %v465, %v483
        %v487 = vadd.f32 %v466, %v484
        %v488 = vadd.f32 %v467, %v485
        %v489 = vrot.slane %v441, 5
        %v490 = vrot.slane %v442, 5
        %v491 = vrot.slane %v443, 5
        %v492 = vsel %vm189, %v490, %v491
        %v493 = vsel %vm189, %v489, %v490
        %v494 = vsel %vm189, %v491, %v489
        %v495 = vrot.slane %v441, 3
        %v496 = vrot.slane %v442, 3
        %v497 = vrot.slane %v443, 3
        %v498 = vsel %vm196, %v496, %v497
        %v499 = vsel %vm196, %v495, %v496
        %v500 = vsel %vm196, %v497, %v495
        %v501 = vadd.f32 %v494, %v499
        %v502 = vadd.f32 %v493, %v498
        %v503 = vadd.f32 %v492, %v500
        %v504 = vmul.f32 %v501, 0.012560201
        %v505 = vmul.f32 %v502, 0.012560201
        %v506 = vmul.f32 %v503, 0.012560201
        %v507 = vadd.f32 %v486, %v504
        %v508 = vadd.f32 %v487, %v505
        %v509 = vadd.f32 %v488, %v506
        %v510 = vmax.f32 %v507, 1e-12
        %v511 = vmax.f32 %v508, 1e-12
        %v512 = vmax.f32 %v509, 1e-12
        %v513 = vrcp.pop %v510
        %v514 = vrcp.pop %v511
        %v515 = vrcp.pop %v512
        %v516 = vmul.f32 %v510, %v513
        %v517 = vmul.f32 %v511, %v514
        %v518 = vmul.f32 %v512, %v515
        %v519 = vsub.f32 2.0, %v516
        %v520 = vsub.f32 2.0, %v517
        %v521 = vsub.f32 2.0, %v518
        %v522 = vmul.f32 %v513, %v519
        %v523 = vmul.f32 %v514, %v520
        %v524 = vmul.f32 %v515, %v521
        %v525 = vmul.f32 %v375, %v522
        %v526 = vmul.f32 %v376, %v523
        %v527 = vmul.f32 %v377, %v524
        %v528 = vmul.f32 %v525, %v68
        %v529 = vmul.f32 %v526, %v69
        %v530 = vmul.f32 %v527, %v70
        %v531 = vsel %vm26, %v23, %v528
        %v532 = vsel %vm27, %v24, %v529
        %v533 = vsel %vm28, %v25, %v530
        %534 = vst [vmem:[#allocation6] sm:$0xff] %v531
        %535 = vst [vmem:[#allocation6 + $0x8] sm:$0xff] %v532
        %536 = vst [vmem:[#allocation6 + $0x10] sm:$0xff] %v533
        %vm537 = vcmp.eq.f32.partialorder %v531, 0.0
        %vm538 = vcmp.eq.f32.partialorder %v532, 0.0
        %vm539 = vcmp.eq.f32.partialorder %v533, 0.0
        %v540 = vsel %vm537, 1.0, 0.0
        %v541 = vsel %vm538, 1.0, 0.0
        %v542 = vsel %vm539, 1.0, 0.0
        %v543 = vmul.f32 %v68, %v540
        %v544 = vmul.f32 %v69, %v541
        %v545 = vmul.f32 %v70, %v542
        %v546 = vadd.f32 %v543, %v544
        %v547 = vadd.f32 %v546, %v545
        %548 = vadd.xlane.f32.xlu0 %v547
        %v549 = vpop.xlane.xlu0 %548
        %v550 = vrot.slane %v549, 4
        %v551 = vadd.f32 %v549, %v550
        %v552 = vrot.slane %v551, 2
        %v553 = vadd.f32 %v551, %v552
        %v554 = vrot.slane %v553, 1
        %v555 = vadd.f32 %v553, %v554
        %s556 = vtos %v555
        %p557 = scmp.eq.f32.partialorder %s556, 0.0
        %s558 = scalar_select %p557, 1, 0
        %559 = sst [smem:[%s221]] %s558
      $region20: #{tpu_custom_call.1} parent=13 // pred_fallthru
        _
      %p560 = scmp.ne.s32.totalorder %s229, 0
      // Predicated region
      $region21: #{tpu_custom_call.1} parent=13 // pred_check
        %p561 = pneg %p560
      $region22: #{tpu_custom_call.1} parent=13 // pred_check_branch
        %563 = sbr.rel (%p561) target = $region24
      $region23: #{tpu_custom_call.1} parent=13 // pred_region
        %v564 = vld [vmem:[#allocation6] sm:$0xff]
        %v565 = vld [vmem:[#allocation6 + $0x8] sm:$0xff]
        %v566 = vld [vmem:[#allocation6 + $0x10] sm:$0xff]
        %v567 = vmul.f32 %v564, 0.34263152
        %v568 = vmul.f32 %v565, 0.34263152
        %v569 = vmul.f32 %v566, 0.34263152
        %570 = vrot.lane.b32.xlu0 %v564, 1
        %v571 = vpop.permute.xlu0 %570
        %572 = vrot.lane.b32.xlu0 %v565, 1
        %v573 = vpop.permute.xlu0 %572
        %574 = vrot.lane.b32.xlu0 %v566, 1
        %v575 = vpop.permute.xlu0 %574
        %576 = vrot.lane.b32.xlu0 %v564, 127
        %v577 = vpop.permute.xlu0 %576
        %578 = vrot.lane.b32.xlu0 %v565, 127
        %v579 = vpop.permute.xlu0 %578
        %580 = vrot.lane.b32.xlu0 %v566, 127
        %v581 = vpop.permute.xlu0 %580
        %v582 = vadd.f32 %v571, %v577
        %v583 = vadd.f32 %v573, %v579
        %v584 = vadd.f32 %v575, %v581
        %v585 = vmul.f32 %v582, 0.23729607
        %v586 = vmul.f32 %v583, 0.23729607
        %v587 = vmul.f32 %v584, 0.23729607
        %v588 = vadd.f32 %v567, %v585
        %v589 = vadd.f32 %v568, %v586
        %v590 = vadd.f32 %v569, %v587
        %591 = vrot.lane.b32.xlu0 %v564, 2
        %v592 = vpop.permute.xlu0 %591
        %593 = vrot.lane.b32.xlu0 %v565, 2
        %v594 = vpop.permute.xlu0 %593
        %595 = vrot.lane.b32.xlu0 %v566, 2
        %v596 = vpop.permute.xlu0 %595
        %597 = vrot.lane.b32.xlu0 %v564, 126
        %v598 = vpop.permute.xlu0 %597
        %599 = vrot.lane.b32.xlu0 %v565, 126
        %v600 = vpop.permute.xlu0 %599
        %601 = vrot.lane.b32.xlu0 %v566, 126
        %v602 = vpop.permute.xlu0 %601
        %v603 = vadd.f32 %v592, %v598
        %v604 = vadd.f32 %v594, %v600
        %v605 = vadd.f32 %v596, %v602
        %v606 = vmul.f32 %v603, 0.07882796
        %v607 = vmul.f32 %v604, 0.07882796
        %v608 = vmul.f32 %v605, 0.07882796
        %v609 = vadd.f32 %v588, %v606
        %v610 = vadd.f32 %v589, %v607
        %v611 = vadd.f32 %v590, %v608
        %612 = vrot.lane.b32.xlu0 %v564, 3
        %v613 = vpop.permute.xlu0 %612
        %614 = vrot.lane.b32.xlu0 %v565, 3
        %v615 = vpop.permute.xlu0 %614
        %616 = vrot.lane.b32.xlu0 %v566, 3
        %v617 = vpop.permute.xlu0 %616
        %618 = vrot.lane.b32.xlu0 %v564, 125
        %v619 = vpop.permute.xlu0 %618
        %620 = vrot.lane.b32.xlu0 %v565, 125
        %v621 = vpop.permute.xlu0 %620
        %622 = vrot.lane.b32.xlu0 %v566, 125
        %v623 = vpop.permute.xlu0 %622
        %v624 = vadd.f32 %v613, %v619
        %v625 = vadd.f32 %v615, %v621
        %v626 = vadd.f32 %v617, %v623
        %v627 = vmul.f32 %v624, 0.012560201
        %v628 = vmul.f32 %v625, 0.012560201
        %v629 = vmul.f32 %v626, 0.012560201
        %v630 = vadd.f32 %v609, %v627
        %v631 = vadd.f32 %v610, %v628
        %v632 = vadd.f32 %v611, %v629
        %v633 = vmul.f32 %v630, 0.34263152
        %v634 = vmul.f32 %v631, 0.34263152
        %v635 = vmul.f32 %v632, 0.34263152
        %v636 = vrot.slane %v630, 7
        %v637 = vrot.slane %v631, 7
        %v638 = vrot.slane %v632, 7
        %v639 = vsel %vm143, %v637, %v638
        %v640 = vsel %vm143, %v636, %v637
        %v641 = vsel %vm143, %v638, %v636
        %v642 = vrot.slane %v630, 1
        %v643 = vrot.slane %v631, 1
        %v644 = vrot.slane %v632, 1
        %v645 = vsel %vm150, %v643, %v644
        %v646 = vsel %vm150, %v642, %v643
        %v647 = vsel %vm150, %v644, %v642
        %v648 = vadd.f32 %v641, %v646
        %v649 = vadd.f32 %v640, %v645
        %v650 = vadd.f32 %v639, %v647
        %v651 = vmul.f32 %v648, 0.23729607
        %v652 = vmul.f32 %v649, 0.23729607
        %v653 = vmul.f32 %v650, 0.23729607
        %v654 = vadd.f32 %v633, %v651
        %v655 = vadd.f32 %v634, %v652
        %v656 = vadd.f32 %v635, %v653
        %v657 = vrot.slane %v630, 6
        %v658 = vrot.slane %v631, 6
        %v659 = vrot.slane %v632, 6
        %v660 = vsel %vm166, %v658, %v659
        %v661 = vsel %vm166, %v657, %v658
        %v662 = vsel %vm166, %v659, %v657
        %v663 = vrot.slane %v630, 2
        %v664 = vrot.slane %v631, 2
        %v665 = vrot.slane %v632, 2
        %v666 = vsel %vm173, %v664, %v665
        %v667 = vsel %vm173, %v663, %v664
        %v668 = vsel %vm173, %v665, %v663
        %v669 = vadd.f32 %v662, %v667
        %v670 = vadd.f32 %v661, %v666
        %v671 = vadd.f32 %v660, %v668
        %v672 = vmul.f32 %v669, 0.07882796
        %v673 = vmul.f32 %v670, 0.07882796
        %v674 = vmul.f32 %v671, 0.07882796
        %v675 = vadd.f32 %v654, %v672
        %v676 = vadd.f32 %v655, %v673
        %v677 = vadd.f32 %v656, %v674
        %v678 = vrot.slane %v630, 5
        %v679 = vrot.slane %v631, 5
        %v680 = vrot.slane %v632, 5
        %v681 = vsel %vm189, %v679, %v680
        %v682 = vsel %vm189, %v678, %v679
        %v683 = vsel %vm189, %v680, %v678
        %v684 = vrot.slane %v630, 3
        %v685 = vrot.slane %v631, 3
        %v686 = vrot.slane %v632, 3
        %v687 = vsel %vm196, %v685, %v686
        %v688 = vsel %vm196, %v684, %v685
        %v689 = vsel %vm196, %v686, %v684
        %v690 = vadd.f32 %v683, %v688
        %v691 = vadd.f32 %v682, %v687
        %v692 = vadd.f32 %v681, %v689
        %v693 = vmul.f32 %v690, 0.012560201
        %v694 = vmul.f32 %v691, 0.012560201
        %v695 = vmul.f32 %v692, 0.012560201
        %v696 = vadd.f32 %v675, %v693
        %v697 = vadd.f32 %v676, %v694
        %v698 = vadd.f32 %v677, %v695
        %v699 = vmul.f32 %v696, %v213
        %v700 = vmul.f32 %v697, %v215
        %v701 = vmul.f32 %v698, %v217
        %v702 = vsel %vm26, %v23, %v699
        %v703 = vsel %vm27, %v24, %v700
        %v704 = vsel %vm28, %v25, %v701
        %705 = vst [vmem:[#allocation6] sm:$0xff] %v702
        %706 = vst [vmem:[#allocation6 + $0x8] sm:$0xff] %v703
        %707 = vst [vmem:[#allocation6 + $0x10] sm:$0xff] %v704
      $region24: #{tpu_custom_call.1} parent=13 // pred_fallthru
        _
    $region14: #{tpu_custom_call.1} parent=1 // loop_footer
      %s228 = sadd.s32 1, %s224
    $region15: #{tpu_custom_call.1} parent=1 // loop_footer_branch
      %223 = sbr.rel target = $region11
    $region16: #{tpu_custom_call.1} parent=1 // loop_exit
      _
    // Predicated region
    $region25: #{tpu_custom_call.1} parent=1 // pred_check
      _
    $region26: #{tpu_custom_call.1} parent=1 // pred_check_branch
      %709 = sbr.rel (0) target = $region28
    $region27: #{tpu_custom_call.1} parent=1 // pred_region
      %s711 = ssub.s32 384, 384
      %712 = vsyncadd [#allocation5], %s711
      %s713 = sshll.u32 [#allocation6], 4
      %s714 = int_to_ptr.vmem [resolvable:$true] %s713
      %719 = dma.vmem_to_hbm [thread:$0]  %s714, 384, %s1, [#allocation5], 128, 128, 8
    $region28: #{tpu_custom_call.1} parent=1 // pred_fallthru
      _
    // Predicated region
    $region29: #{tpu_custom_call.1} parent=1 // pred_check
      _
    $region30: #{tpu_custom_call.1} parent=1 // pred_check_branch
      %721 = sbr.rel (0) target = $region32
    $region31: #{tpu_custom_call.1} parent=1 // pred_region
      %722 = dma.done [#allocation5], 384
    $region32: #{tpu_custom_call.1} parent=1 // pred_fallthru
      _
    %723 = vsyncpa [#allocation4], 1
    %724 = vsyncpa [#allocation5], 1

</llo_original>
